<compile_context>
chip_gen: v7x
topology: tpu7x:2x2x1
jax: 0.10.0
libtpu: 0.0.40
codegen_flags: <defaults>
</compile_context>

<pallas_src>
import functools

import jax
import jax.numpy as jnp
from jax.experimental import pallas as pl
from jax.experimental.pallas import tpu as pltpu

_LANE = 128


def _soft_iou_partial_kernel(pred_ref, tgt_ref, out_ref, *,
                             blocks_per_core, block_rows, total_blocks,
                             total_elems, needs_mask):
    c = pl.program_id(0)                 # core-split index ("parallel")
    i = pl.program_id(1)                 # reduction step ("arbitrary")
    b = c * blocks_per_core + i          # logical (unclamped) block index

    @pl.when(i == 0)
    def _():
        out_ref[...] = jnp.zeros_like(out_ref)

    x = pred_ref[...].astype(jnp.float32)
    # sigmoid(x) == 0.5*tanh(x/2) + 0.5 : keeps the transcendental on the EUP
    # (separate VLIW slot) rather than an exp/div/select chain on the VALU.
    p = 0.5 * jnp.tanh(0.5 * x) + 0.5
    t = tgt_ref[...].astype(jnp.float32)

    def accumulate(pv, tv):
        pt = jnp.sum(pv * tv, axis=0, keepdims=True)   # (1, 128) sum(p*t)
        ps = jnp.sum(pv + tv, axis=0, keepdims=True)   # (1, 128) sum(p+t)
        # Single fused RMW on rows 0:2 of the VMEM-resident output block.
        out_ref[0, 0:2, :] += jnp.concatenate([pt, ps], axis=0)

    if not needs_mask:
        accumulate(p, t)
    else:
        # Only the last logical block (ragged tail / lane pad) and any fully
        # out-of-range clamped block of an uneven core split need masking;
        # every interior block takes the cheap unmasked path.
        @pl.when(b < total_blocks - 1)
        def _():
            accumulate(p, t)

        @pl.when(b >= total_blocks - 1)
        def _():
            row = jax.lax.broadcasted_iota(jnp.int32, (block_rows, _LANE), 0)
            lane = jax.lax.broadcasted_iota(jnp.int32, (block_rows, _LANE), 1)
            gidx = (b * block_rows + row) * _LANE + lane
            valid = gidx < total_elems
            # NOTE: must stay jnp.where(valid, x, 0) -- the out-of-bounds tail
            # of the window may hold NaNs and NaN * 0 == NaN.
            accumulate(jnp.where(valid, p, 0.0), jnp.where(valid, t, 0.0))


def _num_core_splits():
    # A 2-way split only helps on multi-TensorCore chips (v7x). On v5e/v6e it
    # is just a serial loop split that can force masking on every block.
    try:
        kind = jax.devices()[0].device_kind.lower()
    except Exception:
        return 1
    return 2 if ("v7" in kind or "tpu7" in kind) else 1


def _sublane_multiple(dtype):
    # f32 -> 8, bf16 -> 16, int8/bool/fp8 -> 32 rows per sublane tile.
    return max(8, 32 // jnp.dtype(dtype).itemsize)


def soft_iou_loss(pred, target, *, block_rows=4096):
    assert pred.shape == target.shape
    n = pred.size
    pred_f = pred.reshape(-1)
    tgt_f = target.reshape(-1)

    # Lane-pad only when the flat size isn't a multiple of 128 (rare for NCHW
    # image tensors). Pad values are masked inside the kernel.
    rem = n % _LANE
    if rem:
        pad = _LANE - rem
        pred_f = jnp.pad(pred_f, (0, pad))
        tgt_f = jnp.pad(tgt_f, (0, pad))

    rows = pred_f.size // _LANE
    pred2 = pred_f.reshape(rows, _LANE)
    tgt2 = tgt_f.reshape(rows, _LANE)

    # Tile: whole array (full-dim blocks are always legal) or block_rows
    # rounded down to the sublane packing requirement of the input dtypes.
    sub = max(_sublane_multiple(pred.dtype), _sublane_multiple(target.dtype))
    if rows <= block_rows:
        block_rows_eff = rows
    else:
        block_rows_eff = max(sub, (block_rows // sub) * sub)

    total_blocks = pl.cdiv(rows, block_rows_eff)
    splits = min(_num_core_splits(), total_blocks)
    bpc = pl.cdiv(total_blocks, splits)              # blocks per core split
    coverage = splits * bpc * block_rows_eff * _LANE
    assert coverage < 2 ** 31, "int32 index math in the mask would overflow"
    needs_mask = coverage != n
    last_block = total_blocks - 1

    def in_map(c, i):
        # Clamp so an uneven core split never DMAs past the array; the masked
        # path (keyed on the unclamped index) zeroes such blocks.
        return (jnp.minimum(c * bpc + i, last_block), 0)

    kernel = functools.partial(
        _soft_iou_partial_kernel,
        blocks_per_core=bpc,
        block_rows=block_rows_eff,
        total_blocks=total_blocks,
        total_elems=n,
        needs_mask=needs_mask,
    )

    bytes_in = (pred2.size * pred2.dtype.itemsize
                + tgt2.size * tgt2.dtype.itemsize)

    # TODO(synk): on v7x, verify with xprof that the leading "parallel" axis
    # actually shards across both TensorCores; otherwise switch that axis to
    # pltpu.CORE_PARALLEL.
    partials = pl.pallas_call(
        kernel,
        out_shape=jax.ShapeDtypeStruct((splits, 8, _LANE), jnp.float32),
        grid_spec=pltpu.PrefetchScalarGridSpec(
            num_scalar_prefetch=0,
            grid=(splits, bpc),
            in_specs=[
                pl.BlockSpec((block_rows_eff, _LANE), in_map),
                pl.BlockSpec((block_rows_eff, _LANE), in_map),
            ],
            out_specs=pl.BlockSpec((1, 8, _LANE), lambda c, i: (c, 0, 0)),
        ),
        compiler_params=pltpu.CompilerParams(
            dimension_semantics=("parallel", "arbitrary")),
        cost_estimate=pl.CostEstimate(
            flops=4 * n,
            transcendentals=n,
            bytes_accessed=bytes_in + splits * 8 * _LANE * 4),
    )(pred2, tgt2)

    # Tiny finalization on (splits, 128) partials: combine cores + lane reduce.
    smooth = jnp.float32(1.0)
    inter = jnp.sum(partials[:, 0, :])
    pt_sum = jnp.sum(partials[:, 1, :])
    iou = (inter + smooth) / (pt_sum - inter + smooth)
    return jnp.float32(1.0) - iou


def soft_iou_loss_ref(pred, target):
    p = jax.nn.sigmoid(pred.astype(jnp.float32))
    t = target.astype(jnp.float32)
    smooth = 1.0
    inter = jnp.sum(p * t)
    loss = (inter + smooth) / (jnp.sum(p) + jnp.sum(t) - inter + smooth)
    return 1.0 - loss


if __name__ == "__main__":
    key = jax.random.PRNGKey(0)
    k1, k2 = jax.random.split(key)
    # NCHW, like the PyTorch module's conv-style inputs.
    pred = jax.random.normal(k1, (2, 4, 16, 16), dtype=jnp.float32)
    target = (jax.random.uniform(k2, (2, 4, 16, 16)) > 0.5).astype(jnp.float32)

    loss = jax.block_until_ready(soft_iou_loss(pred, target))
    ref = jax.block_until_ready(soft_iou_loss_ref(pred, target))

    assert jnp.allclose(loss, ref, atol=1e-5, rtol=1e-5), (loss, ref)
    print("KERNEL_OK")
</pallas_src>

<mosaic_0001>
module attributes {stable_mosaic.version = 11 : i64} {
  func.func @_soft_iou_partial_kernel(%arg0: i32, %arg1: i32, %arg2: memref<16x128xf32, #tpu.memory_space<vmem>>, %arg3: memref<16x128xf32, #tpu.memory_space<vmem>>, %arg4: memref<1x8x128xf32, #tpu.memory_space<vmem>>) attributes {dimension_semantics = [#tpu.dimension_semantics<parallel>, #tpu.dimension_semantics<arbitrary>], iteration_bounds = array<i64: 1, 1>, scalar_prefetch = 0 : i64, scratch_operands = 0 : i64, tpu.core_type = #tpu.core_type<tc>, window_params = [{transform_indices = @transform_0, window_bounds = array<i64: 16, 128>}, {transform_indices = @transform_1, window_bounds = array<i64: 16, 128>}, {transform_indices = @transform_2, window_bounds = array<i64: 1, 8, 128>}]} {
    %c0_i32 = arith.constant 0 : i32
    %0 = arith.cmpi eq, %arg1, %c0_i32 : i32
    %1 = arith.extui %0 : i1 to i32
    %c0_i32_0 = arith.constant 0 : i32
    %2 = arith.cmpi ne, %1, %c0_i32_0 : i32
    scf.if %2 {
      %cst_14 = arith.constant 0.000000e+00 : f32
      %25 = vector.broadcast %cst_14 : f32 to vector<1x8x128xf32>
      %c0_15 = arith.constant 0 : index
      %c0_16 = arith.constant 0 : index
      %c0_17 = arith.constant 0 : index
      %26 = vector.load %arg4[%c0_15, %c0_16, %c0_17] : memref<1x8x128xf32, #tpu.memory_space<vmem>>, vector<1x8x128xf32>
      tpu.vector_store %arg4[%c0_15, %c0_16, %c0_17], %25 {strides = array<i32>} : memref<1x8x128xf32, #tpu.memory_space<vmem>>, vector<1x8x128xf32>,
    } else {
    }
    %c0 = arith.constant 0 : index
    %c0_1 = arith.constant 0 : index
    %3 = vector.load %arg2[%c0, %c0_1] : memref<16x128xf32, #tpu.memory_space<vmem>>, vector<16x128xf32>
    %cst = arith.constant 5.000000e-01 : f32
    %4 = vector.broadcast %cst : f32 to vector<16x128xf32>
    %5 = arith.mulf %4, %3 : vector<16x128xf32>
    %6 = math.tanh %5 : vector<16x128xf32>
    %cst_2 = arith.constant 5.000000e-01 : f32
    %7 = vector.broadcast %cst_2 : f32 to vector<16x128xf32>
    %8 = arith.mulf %7, %6 : vector<16x128xf32>
    %cst_3 = arith.constant 5.000000e-01 : f32
    %9 = vector.broadcast %cst_3 : f32 to vector<16x128xf32>
    %10 = arith.addf %8, %9 : vector<16x128xf32>
    %c0_4 = arith.constant 0 : index
    %c0_5 = arith.constant 0 : index
    %11 = vector.load %arg3[%c0_4, %c0_5] : memref<16x128xf32, #tpu.memory_space<vmem>>, vector<16x128xf32>
    %12 = arith.mulf %10, %11 : vector<16x128xf32>
    %cst_6 = arith.constant dense<0.000000e+00> : vector<128xf32>
    %13 = vector.multi_reduction <add>, %12, %cst_6 [0] : vector<16x128xf32> to vector<128xf32>
    %14 = vector.shape_cast %13 : vector<128xf32> to vector<1x128xf32>
    %15 = arith.addf %10, %11 : vector<16x128xf32>
    %cst_7 = arith.constant dense<0.000000e+00> : vector<128xf32>
    %16 = vector.multi_reduction <add>, %15, %cst_7 [0] : vector<16x128xf32> to vector<128xf32>
    %17 = vector.shape_cast %16 : vector<128xf32> to vector<1x128xf32>
    %c0_8 = arith.constant 0 : index
    %c0_9 = arith.constant 0 : index
    %c0_10 = arith.constant 0 : index
    %18 = vector.load %arg4[%c0_8, %c0_9, %c0_10] : memref<1x8x128xf32, #tpu.memory_space<vmem>>, vector<1x2x128xf32>
    %19 = vector.shape_cast %18 : vector<1x2x128xf32> to vector<2x128xf32>
    %20 = tpu.concatenate %14, %17 in 0 : vector<1x128xf32>, vector<1x128xf32> -> vector<2x128xf32>
    %21 = arith.addf %19, %20 : vector<2x128xf32>
    %c0_11 = arith.constant 0 : index
    %c0_12 = arith.constant 0 : index
    %c0_13 = arith.constant 0 : index
    %22 = vector.load %arg4[%c0_11, %c0_12, %c0_13] : memref<1x8x128xf32, #tpu.memory_space<vmem>>, vector<1x2x128xf32>
    %23 = vector.shape_cast %22 : vector<1x2x128xf32> to vector<2x128xf32>
    %24 = vector.shape_cast %21 : vector<2x128xf32> to vector<1x2x128xf32>
    tpu.vector_store %arg4[%c0_11, %c0_12, %c0_13], %24 {strides = array<i32>} : memref<1x8x128xf32, #tpu.memory_space<vmem>>, vector<1x2x128xf32>,
    return
  }
  func.func @transform_0(%arg0: i32, %arg1: i32) -> (i32, i32) {
    %c1_i32 = arith.constant 1 : i32
    %0 = arith.muli %arg0, %c1_i32 : i32
    %1 = arith.addi %0, %arg1 : i32
    %c0_i32 = arith.constant 0 : i32
    %2 = arith.minsi %1, %c0_i32 : i32
    %c0_i32_0 = arith.constant 0 : i32
    %c0_i32_1 = arith.constant 0 : i32
    return %2, %c0_i32_0 : i32, i32
  }
  func.func @transform_1(%arg0: i32, %arg1: i32) -> (i32, i32) {
    %c1_i32 = arith.constant 1 : i32
    %0 = arith.muli %arg0, %c1_i32 : i32
    %1 = arith.addi %0, %arg1 : i32
    %c0_i32 = arith.constant 0 : i32
    %2 = arith.minsi %1, %c0_i32 : i32
    %c0_i32_0 = arith.constant 0 : i32
    %c0_i32_1 = arith.constant 0 : i32
    return %2, %c0_i32_0 : i32, i32
  }
  func.func @transform_2(%arg0: i32, %arg1: i32) -> (i32, i32, i32) {
    %c0_i32 = arith.constant 0 : i32
    %c0_i32_0 = arith.constant 0 : i32
    %c0_i32_1 = arith.constant 0 : i32
    return %arg0, %c0_i32, %c0_i32_0 : i32, i32, i32
  }
}

</mosaic_0001>

<llo_original>
// kernel: tpu_custom_call.1
$region0: #{tpu_custom_call.1}
  #allocation0 [shape = 'u32[]', space=smem, size = 0x4, offset = 0x4, fixed_abs, tag = 'smem constant byte address 0x4 - core index']
  #allocation1 [shape = 'u32[144,128]{1,0:T(1,128)}', space=vmem, size = 0x12000, scoped, tag = 'internal scratch']
  %s0 = inlined_call_operand.hbm [shape: f32[16,128], index: 0, kind: input, shape index: {}]
  %s1 = inlined_call_operand.hbm [shape: f32[16,128], index: 1, kind: input, shape index: {}]
  %s2 = inlined_call_operand.hbm [shape: f32[1,8,128], index: 2, kind: output, shape index: {}]
  %s3 = sld [smem:[#allocation0]]
  $region30: #{tpu_custom_call.1} parent=0
    _
  %s5 = ssub.s32 1, %s3
  %s6 = scalar_select 0, %s5, %s3
  $region1: #{tpu_custom_call.1} parent=0
    #allocation2 [shape = 'u8[8192]{0}', space=vmem, size = 0x2000, scoped, tag = 'input window, operand 0, single buffered']
    #allocation3 [shape = 's32[1]{0}', space=sflag, size = 0x4, scoped, tag = 'scoped memory for tpu_custom_call.1']
    #allocation4 [shape = 's32[1]{0}', space=sflag, size = 0x4, scoped, tag = 'scoped memory for tpu_custom_call.1']
    #allocation5 [shape = 'u8[8192]{0}', space=vmem, size = 0x2000, scoped, tag = 'input window, operand 1, single buffered']
    #allocation6 [shape = 's32[1]{0}', space=sflag, size = 0x4, scoped, tag = 'scoped memory for tpu_custom_call.1']
    #allocation7 [shape = 'u8[4096]{0}', space=vmem, size = 0x1000, scoped, tag = 'output window, operand 0, single buffered']
    %7 = vsyncpa [#allocation3], 0
    %8 = vsyncpa [#allocation6], 0
    %9 = vsyncpa [#allocation4], 0
    // Predicated region
    $region2: #{tpu_custom_call.1} parent=1 // pred_check
      _
    $region3: #{tpu_custom_call.1} parent=1 // pred_check_branch
      %11 = sbr.rel (0) target = $region5
    $region4: #{tpu_custom_call.1} parent=1 // pred_region
      %s12 = sadd.s32 0, 0
      %p13 = scmp.lt.s32.totalorder %s12, 0
      %s14 = scalar_select %p13, %s12, 0
      %s15 = smul.u32 2, %s14
      %s17 = ssub.s32 256, 256
      %18 = vsyncadd [#allocation3], %s17
      %s19 = smul.addr %s15, 128
      %s20 = scalar_lea.hbm %s0, %s19
      %s21 = sshll.u32 [#allocation2], 4
      %s22 = int_to_ptr.vmem [resolvable:$true] %s21
      %27 = dma.hbm_to_vmem [thread:$0]  %s20, 256, %s22, [#allocation3], 128, 128, 8
    $region5: #{tpu_custom_call.1} parent=1 // pred_fallthru
      _
    // Predicated region
    $region6: #{tpu_custom_call.1} parent=1 // pred_check
      _
    $region7: #{tpu_custom_call.1} parent=1 // pred_check_branch
      %29 = sbr.rel (0) target = $region9
    $region8: #{tpu_custom_call.1} parent=1 // pred_region
      %s30 = sadd.s32 0, 0
      %p31 = scmp.lt.s32.totalorder %s30, 0
      %s32 = scalar_select %p31, %s30, 0
      %s33 = smul.u32 2, %s32
      %s35 = ssub.s32 256, 256
      %36 = vsyncadd [#allocation6], %s35
      %s37 = smul.addr %s33, 128
      %s38 = scalar_lea.hbm %s1, %s37
      %s39 = sshll.u32 [#allocation5], 4
      %s40 = int_to_ptr.vmem [resolvable:$true] %s39
      %45 = dma.hbm_to_vmem [thread:$0]  %s38, 256, %s40, [#allocation6], 128, 128, 8
    $region9: #{tpu_custom_call.1} parent=1 // pred_fallthru
      _
    // Predicated region
    $region10: #{tpu_custom_call.1} parent=1 // pred_check
      _
    $region11: #{tpu_custom_call.1} parent=1 // pred_check_branch
      %47 = sbr.rel (0) target = $region13
    $region12: #{tpu_custom_call.1} parent=1 // pred_region
      %48 = dma.done [#allocation3], 256
    $region13: #{tpu_custom_call.1} parent=1 // pred_fallthru
      _
    // Predicated region
    $region14: #{tpu_custom_call.1} parent=1 // pred_check
      _
    $region15: #{tpu_custom_call.1} parent=1 // pred_check_branch
      %50 = sbr.rel (0) target = $region17
    $region16: #{tpu_custom_call.1} parent=1 // pred_region
      %51 = dma.done [#allocation6], 256
    $region17: #{tpu_custom_call.1} parent=1 // pred_fallthru
      _
    %s52 = sadd.s32 0, 0
    %p53 = scmp.lt.s32.totalorder %s52, 0
    %s54 = scalar_select %p53, %s52, 0
    %s55 = smul.u32 2, %s54
    %s56 = sadd.s32 0, 0
    %p57 = scmp.lt.s32.totalorder %s56, 0
    %s58 = scalar_select %p57, %s56, 0
    %s59 = smul.u32 2, %s58
    %p60 = scmp.eq.s32.totalorder 0, 0
    // Predicated region
    $region18: #{tpu_custom_call.1} parent=1 // pred_check
      %p61 = pneg %p60
    $region19: #{tpu_custom_call.1} parent=1 // pred_check_branch
      %63 = sbr.rel (%p61) target = $region21
    $region20: #{tpu_custom_call.1} parent=1 // pred_region
      %64 = vst [vmem:[#allocation7] sm:$0xff] 0.0
    $region21: #{tpu_custom_call.1} parent=1 // pred_fallthru
      _
    %v65 = vld [vmem:[#allocation2] sm:$0xff]
    %v66 = vld [vmem:[#allocation2 + $0x8] sm:$0xff]
    %v67 = vmul.f32 %v65, 0.5
    %v68 = vmul.f32 %v66, 0.5
    %v69 = vtanh.pop %v67
    %v70 = vtanh.pop %v68
    %v71 = vmul.f32 %v69, 0.5
    %v72 = vmul.f32 %v70, 0.5
    %v73 = vadd.f32 %v71, 0.5
    %v74 = vadd.f32 %v72, 0.5
    %v75 = vld [vmem:[#allocation5] sm:$0xff]
    %v76 = vld [vmem:[#allocation5 + $0x8] sm:$0xff]
    %v77 = vmul.f32 %v73, %v75
    %v78 = vmul.f32 %v74, %v76
    %v79 = vadd.f32 %v77, %v78
    %v80 = vrot.slane %v79, 4
    %v81 = vadd.f32 %v79, %v80
    %v82 = vrot.slane %v81, 2
    %v83 = vadd.f32 %v81, %v82
    %v84 = vrot.slane %v83, 1
    %v85 = vadd.f32 %v83, %v84
    %v86 = vadd.f32 %v73, %v75
    %v87 = vadd.f32 %v74, %v76
    %v88 = vadd.f32 %v86, %v87
    %v89 = vrot.slane %v88, 4
    %v90 = vadd.f32 %v88, %v89
    %v91 = vrot.slane %v90, 2
    %v92 = vadd.f32 %v90, %v91
    %v93 = vrot.slane %v92, 1
    %v94 = vadd.f32 %v92, %v93
    %v95 = vld [vmem:[#allocation7] sm:$0x3]
    %vm96 = vcmask 1040384
    %v97 = vsel %vm96, %v85, %v94
    %v98 = vadd.f32 %v95, %v97
    %99 = vst [vmem:[#allocation7] sm:$0x3] %v98
    // Predicated region
    $region22: #{tpu_custom_call.1} parent=1 // pred_check
      _
    $region23: #{tpu_custom_call.1} parent=1 // pred_check_branch
      %101 = sbr.rel (0) target = $region25
    $region24: #{tpu_custom_call.1} parent=1 // pred_region
      %s103 = ssub.s32 128, 128
      %104 = vsyncadd [#allocation4], %s103
      %s106 = sshll.u32 [#allocation7], 4
      %s107 = int_to_ptr.vmem [resolvable:$true] %s106
      %109 = dma.vmem_to_hbm [thread:$0]  %s107, 128, %s2, [#allocation4]
    $region25: #{tpu_custom_call.1} parent=1 // pred_fallthru
      _
    // Predicated region
    $region26: #{tpu_custom_call.1} parent=1 // pred_check
      _
    $region27: #{tpu_custom_call.1} parent=1 // pred_check_branch
      %111 = sbr.rel (0) target = $region29
    $region28: #{tpu_custom_call.1} parent=1 // pred_region
      %112 = dma.done [#allocation4], 128
    $region29: #{tpu_custom_call.1} parent=1 // pred_fallthru
      _
    %113 = vsyncpa [#allocation3], 1
    %114 = vsyncpa [#allocation6], 1
    %115 = vsyncpa [#allocation4], 1

</llo_original>
